<compile_context>
chip_gen: v7x
topology: tpu7x:2x2x1
jax: 0.10.0
libtpu: 0.0.40
codegen_flags: <defaults>
</compile_context>

<pallas_src>
import jax
import jax.numpy as jnp
from jax.experimental import pallas as pl
from jax.experimental.pallas import tpu as pltpu


def _round_up(a: int, b: int) -> int:
    return ((a + b - 1) // b) * b


def _choose_tm(m: int, d: int, itemsize: int) -> int:
    """Rows per block.

    As large as a ~4 MiB/buffer VMEM budget allows (the pipeline double-buffers
    it -> ~8 MiB resident), capped at 1024 rows, multiple of 8 sublanes, and no
    larger than the 8-rounded problem size so small inputs are not over-padded.
    """
    budget_bytes = 4 * 1024 * 1024
    tm = budget_bytes // max(1, d * itemsize)
    tm = max(8, min(int(tm), 1024))
    tm = (tm // 8) * 8
    tm = min(tm, _round_up(m, 8))
    return max(tm, 8)


def _flag_exit_kernel(x_ref, w_ref, b_ref, o_ref):
    # x_ref: (TM, D) native dtype (VMEM); w_ref: (D, 1) x.dtype (VMEM, resident);
    # b_ref: (1,) f32 scalar (SMEM); o_ref: (TM, 1) x.dtype (VMEM).
    # MXU dot accumulates in f32 -- no full-tile upcast of x needed.
    y = jnp.dot(x_ref[...], w_ref[...], preferred_element_type=jnp.float32)
    y = y + b_ref[0]                          # scalar bias from SMEM
    # Sigmoid in f32 on the small (TM, 1) result only.
    o_ref[...] = (1.0 / (1.0 + jnp.exp(-y))).astype(o_ref.dtype)


def flag_exit_forward(x, weight, bias):
    """x: (..., D); weight: (1, D); bias: (1,). Returns sigmoid(x @ W^T + b), shape (..., 1)."""
    orig_shape = x.shape
    d = orig_shape[-1]
    x2d = x.reshape(-1, d)                               # (M, D)
    m = x2d.shape[0]
    itemsize = jnp.dtype(x.dtype).itemsize

    tm = _choose_tm(m, d, itemsize)
    m_pad = _round_up(m, tm)
    if m_pad != m:
        # Zero-pad rows; padded rows are computed but sliced away below.
        x2d = jnp.pad(x2d, ((0, m_pad - m), (0, 0)))
    num_tiles = m_pad // tm

    # Weight in x's dtype so the MXU consumes it natively (e.g. bf16xbf16 -> f32).
    w = weight.reshape(d, 1).astype(x.dtype)             # (D, 1) == W^T
    b = bias.reshape(1).astype(jnp.float32)              # (1,) SMEM scalar

    out_itemsize = itemsize
    vmem_needed = (2 * tm * d * itemsize                 # double-buffered x tiles
                   + 2 * tm * out_itemsize               # double-buffered out tiles
                   + d * itemsize                        # resident weight column
                   + (2 << 20))                          # headroom
    vmem_limit = int(min(max(vmem_needed, 16 * 1024 * 1024), 64 * 1024 * 1024))

    cost = pl.CostEstimate(
        flops=2 * m * d,
        transcendentals=m,
        bytes_accessed=m * d * itemsize + d * itemsize + m * out_itemsize,
    )

    out = pl.pallas_call(
        _flag_exit_kernel,
        out_shape=jax.ShapeDtypeStruct((m_pad, 1), x.dtype),
        grid=(num_tiles,),
        in_specs=[
            pl.BlockSpec((tm, d), lambda i: (i, 0)),             # x tile stream
            pl.BlockSpec((d, 1), lambda i: (0, 0)),              # weight, resident
            pl.BlockSpec(memory_space=pltpu.MemorySpace.SMEM),   # bias scalar
        ],
        out_specs=pl.BlockSpec((tm, 1), lambda i: (i, 0)),
        compiler_params=pltpu.CompilerParams(
            dimension_semantics=("parallel",),   # M-tiles are independent (megacore)
            vmem_limit_bytes=vmem_limit,
        ),
        cost_estimate=cost,
    )(x2d, w, b)

    if m_pad != m:
        out = out[:m]
    return out.reshape(*orig_shape[:-1], 1)


if __name__ == "__main__":
    key = jax.random.PRNGKey(0)
    kx, kw, kb = jax.random.split(key, 3)

    batch, seq, dim = 2, 8, 32
    x = jax.random.normal(kx, (batch, seq, dim), dtype=jnp.float32)

    # Deterministic nn.Linear(dim, 1)-style init: U(-1/sqrt(dim), 1/sqrt(dim))
    bound = 1.0 / (dim ** 0.5)
    weight = jax.random.uniform(kw, (1, dim), minval=-bound, maxval=bound,
                                dtype=jnp.float32)
    bias = jax.random.uniform(kb, (1,), minval=-bound, maxval=bound,
                              dtype=jnp.float32)

    out = flag_exit_forward(x, weight, bias)
    out = jax.block_until_ready(out)

    # Reference check in plain JAX
    ref = jax.nn.sigmoid(x @ weight.T + bias)
    assert out.shape == (batch, seq, 1)
    assert jnp.allclose(out, ref, atol=1e-5, rtol=1e-5)

    print("KERNEL_OK")
</pallas_src>

<mosaic_0001>
module attributes {stable_mosaic.version = 11 : i64} {
  func.func @_flag_exit_kernel(%arg0: i32, %arg1: memref<16x32xf32, #tpu.memory_space<vmem>>, %arg2: memref<32x1xf32, #tpu.memory_space<vmem>>, %arg3: memref<1xf32, #tpu.memory_space<smem>>, %arg4: memref<16x1xf32, #tpu.memory_space<vmem>>) attributes {dimension_semantics = [#tpu.dimension_semantics<parallel>], iteration_bounds = array<i64: 1>, scalar_prefetch = 0 : i64, scratch_operands = 0 : i64, tpu.core_type = #tpu.core_type<tc>, window_params = [{transform_indices = @transform_0, window_bounds = array<i64: 16, 32>}, {pipeline_mode = #tpu.pipeline_mode<synchronous>, transform_indices = @transform_1, window_bounds = array<i64: 32, 1>}, {transform_indices = @transform_2, window_bounds = array<i64: 1>}, {transform_indices = @transform_3, window_bounds = array<i64: 16, 1>}]} {
    %c0 = arith.constant 0 : index
    %c0_0 = arith.constant 0 : index
    %0 = vector.load %arg1[%c0, %c0_0] : memref<16x32xf32, #tpu.memory_space<vmem>>, vector<16x32xf32>
    %c0_1 = arith.constant 0 : index
    %c0_2 = arith.constant 0 : index
    %1 = vector.load %arg2[%c0_1, %c0_2] : memref<32x1xf32, #tpu.memory_space<vmem>>, vector<32x1xf32>
    %cst = arith.constant dense<0.000000e+00> : vector<16x1xf32>
    %2 = tpu.matmul %0, %1, %cst {dimension_numbers = #tpu.dot_dimension_numbers<[1], [0], [0], [1], [0, 0, 1, 1], [], []>} : vector<16x32xf32>, vector<32x1xf32>, vector<16x1xf32> -> vector<16x1xf32>
    %c0_3 = arith.constant 0 : index
    %3 = memref.load %arg3[%c0_3] : memref<1xf32, #tpu.memory_space<smem>>
    %4 = vector.broadcast %3 : f32 to vector<16x1xf32>
    %5 = arith.addf %2, %4 : vector<16x1xf32>
    %cst_4 = arith.constant 0.000000e+00 : f32
    %6 = vector.broadcast %cst_4 : f32 to vector<16x1xf32>
    %7 = arith.subf %6, %5 : vector<16x1xf32>
    %8 = math.exp %7 : vector<16x1xf32>
    %cst_5 = arith.constant 1.000000e+00 : f32
    %9 = vector.broadcast %cst_5 : f32 to vector<16x1xf32>
    %10 = arith.addf %9, %8 : vector<16x1xf32>
    %cst_6 = arith.constant 1.000000e+00 : f32
    %11 = vector.broadcast %cst_6 : f32 to vector<16x1xf32>
    %12 = arith.divf %11, %10 : vector<16x1xf32>
    %c0_7 = arith.constant 0 : index
    %c0_8 = arith.constant 0 : index
    %13 = vector.load %arg4[%c0_7, %c0_8] : memref<16x1xf32, #tpu.memory_space<vmem>>, vector<16x1xf32>
    tpu.vector_store %arg4[%c0_7, %c0_8], %12 {strides = array<i32>} : memref<16x1xf32, #tpu.memory_space<vmem>>, vector<16x1xf32>,
    return
  }
  func.func @transform_0(%arg0: i32) -> (i32, i32) {
    %c0_i32 = arith.constant 0 : i32
    %c0_i32_0 = arith.constant 0 : i32
    return %arg0, %c0_i32 : i32, i32
  }
  func.func @transform_1(%arg0: i32) -> (i32, i32) {
    %c0_i32 = arith.constant 0 : i32
    %c0_i32_0 = arith.constant 0 : i32
    %c0_i32_1 = arith.constant 0 : i32
    return %c0_i32, %c0_i32_0 : i32, i32
  }
  func.func @transform_2(%arg0: i32) -> i32 {
    %c0_i32 = arith.constant 0 : i32
    %c0_i32_0 = arith.constant 0 : i32
    return %c0_i32 : i32
  }
  func.func @transform_3(%arg0: i32) -> (i32, i32) {
    %c0_i32 = arith.constant 0 : i32
    %c0_i32_0 = arith.constant 0 : i32
    return %arg0, %c0_i32 : i32, i32
  }
}

</mosaic_0001>

<llo_original>
// kernel: tpu_custom_call.1
$region0: #{tpu_custom_call.1}
  #allocation0 [shape = 'u32[]', space=smem, size = 0x4, offset = 0x4, fixed_abs, tag = 'smem constant byte address 0x4 - core index']
  #allocation1 [shape = 'u32[144,128]{1,0:T(1,128)}', space=vmem, size = 0x12000, scoped, tag = 'internal scratch']
  #allocation2 [shape = 'f32[1]{0:T(128)S(6)}', space=smem, size = 0x200, scoped, tag = 'scoped memory for tpu_custom_call.1']
  %s0 = inlined_call_operand.vmem [shape: f32[16,32], index: 0, kind: input, shape index: {}]
  %s1 = inlined_call_operand.vmem [shape: f32[32,1], index: 1, kind: input, shape index: {}]
  %s2 = inlined_call_operand.<no memory space> [shape: f32[1], index: 2, kind: input, shape index: {}]
  %s3 = inlined_call_operand.vmem [shape: f32[16,1], index: 3, kind: output, shape index: {}]
  %s4 = sld [smem:[#allocation0]]
  $region22: #{tpu_custom_call.1} parent=0
    _
  %s6 = ssub.s32 1, %s4
  %s7 = scalar_select 0, %s6, %s4
  %8 = sst [smem:[#allocation2]] %s2
  // Predicated region
  $region2: #{tpu_custom_call.1} parent=0 // pred_check
    _
  $region3: #{tpu_custom_call.1} parent=0 // pred_check_branch
    %10 = sbr.rel (0) target = $region5
  $region4: #{tpu_custom_call.1} parent=0 // pred_region
    _
  $region5: #{tpu_custom_call.1} parent=0 // pred_fallthru
    _
  // Predicated region
  $region6: #{tpu_custom_call.1} parent=0 // pred_check
    _
  $region7: #{tpu_custom_call.1} parent=0 // pred_check_branch
    %12 = sbr.rel (0) target = $region9
  $region8: #{tpu_custom_call.1} parent=0 // pred_region
    _
  $region9: #{tpu_custom_call.1} parent=0 // pred_fallthru
    _
  // Predicated region
  $region10: #{tpu_custom_call.1} parent=0 // pred_check
    _
  $region11: #{tpu_custom_call.1} parent=0 // pred_check_branch
    %14 = sbr.rel (0) target = $region13
  $region12: #{tpu_custom_call.1} parent=0 // pred_region
    _
  $region13: #{tpu_custom_call.1} parent=0 // pred_fallthru
    _
  %v15 = vld [vmem:[%s0] sm:$0xff]
  %v16 = vld [vmem:[%s0 + $0x8] sm:$0xff]
  %v17 = vld [vmem:[%s1] sm:$0xff]
  %v18 = vld [vmem:[%s1 + $0x8] sm:$0xff]
  %v19 = vld [vmem:[%s1 + $0x10] sm:$0xff]
  %v20 = vld [vmem:[%s1 + $0x18] sm:$0xff]
  %s21 = sld [smem:[#allocation2]]
  %v22 = vstv %s21
  %vm23 = vcmask 261120
  %v25 = vsel %vm23, %v15, 0
  %v28 = vsel %vm23, %v16, 0
  %30 = vmatprep.subr.mxu0 0.0
  %31 = vmatpush1.msra.mxu0 %v17
  %32 = vmatprep.subr.mxu0 0.0
  %33 = vmatpush1.msra.mxu0 %v18
  %34 = vmatprep.subr.mxu0 0.0
  %35 = vmatpush1.msra.mxu0 %v19
  %36 = vmatprep.subr.mxu0 0.0
  %37 = vmatpush1.msra.mxu0 %v20
  %38 = vmatprep.subr.mxu0 0.0
  %39 = vmatpush1.msra.mxu0 0.0
  %40 = vmatprep.subr.mxu0 0.0
  %41 = vmatpush1.msra.mxu0 0.0
  %42 = vmatprep.subr.mxu0 0.0
  %43 = vmatpush1.msra.mxu0 0.0
  %44 = vmatprep.subr.mxu0 0.0
  %45 = vmatpush1.msra.mxu0 0.0
  %46 = vmatprep.subr.mxu0 0.0
  %47 = vmatpush1.msra.mxu0 0.0
  %48 = vmatprep.subr.mxu0 0.0
  %49 = vmatpush1.msra.mxu0 0.0
  %50 = vmatprep.subr.mxu0 0.0
  %51 = vmatpush1.msra.mxu0 0.0
  %52 = vmatprep.subr.mxu0 0.0
  %53 = vmatpush1.msra.mxu0 0.0
  %54 = vmatprep.subr.mxu0 0.0
  %55 = vmatpush1.msra.mxu0 0.0
  %56 = vmatprep.subr.mxu0 0.0
  %57 = vmatpush1.msra.mxu0 0.0
  %58 = vmatprep.subr.mxu0 0.0
  %59 = vmatpush1.msra.mxu0 0.0
  %60 = vmatprep.subr.mxu0 0.0
  %61 = vmatpush1.msra.mxu0 0.0
  %62 = vmatprep.subr.mxu0 0.0
  %63 = vmatpush1.msra.mxu0 0.0
  %64 = vmatprep.subr.mxu0 0.0
  %65 = vmatpush1.msra.mxu0 0.0
  %66 = vmatprep.subr.mxu0 0.0
  %67 = vmatpush1.msra.mxu0 0.0
  %68 = vmatprep.subr.mxu0 0.0
  %69 = vmatpush1.msra.mxu0 0.0
  %70 = vmatprep.subr.mxu0 0.0
  %71 = vmatpush1.msra.mxu0 0.0
  %72 = vmatprep.subr.mxu0 0.0
  %73 = vmatpush1.msra.mxu0 0.0
  %74 = vmatprep.subr.mxu0 0.0
  %75 = vmatpush1.msra.mxu0 0.0
  %76 = vmatprep.subr.mxu0 0.0
  %77 = vmatpush1.msra.mxu0 0.0
  %78 = vmatprep.subr.mxu0 0.0
  %79 = vmatpush1.msra.mxu0 0.0
  %80 = vmatprep.subr.mxu0 0.0
  %81 = vmatpush1.msra.mxu0 0.0
  %82 = vmatprep.subr.mxu0 0.0
  %83 = vmatpush1.msra.mxu0 0.0
  %84 = vmatprep.subr.mxu0 0.0
  %85 = vmatpush1.msra.mxu0 0.0
  %86 = vmatprep.subr.mxu0 0.0
  %87 = vmatpush1.msra.mxu0 0.0
  %88 = vmatprep.subr.mxu0 0.0
  %89 = vmatpush1.msra.mxu0 0.0
  %90 = vmatprep.subr.mxu0 0.0
  %91 = vmatpush1.msra.mxu0 0.0
  %92 = vmatprep.subr.mxu0 0.0
  %93 = vmatpush1.msra.mxu0 0.0
  %94 = vmatprep.mubr.f32.mxu0 0.0
  %95 = vmatmul.mubr.f32.gmra.mrb[0].mxu0 %v25
  %v96 = vpop.f32.mrb[0].mxu0
  %v97 = vadd.f32 %v22, %v96
  %v98 = vpop.f32.mrb[0].mxu0
  %99 = vmatprep.mubr.f32.mxu0 0.0
  %100 = vmatmul.mubr.f32.gmra.mrb[0].mxu0 %v28
  %v101 = vpop.f32.mrb[0].mxu0
  %v102 = vadd.f32 %v22, %v101
  %v103 = vpop.f32.mrb[0].mxu0
  %104 = vdwg.mxu0
  %v105 = vsub.f32 0.0, %v97
  %v106 = vsub.f32 0.0, %v102
  %v107 = vmul.f32 %v105, 1.442695
  %v108 = vpow.pop %v107
  %v109 = vmul.f32 %v106, 1.442695
  %v110 = vpow.pop %v109
  %v111 = vadd.f32 %v108, 1.0
  %v112 = vadd.f32 %v110, 1.0
  %v113 = vrcp.pop %v111
  %v114 = vmul.f32 1.0, %v113
  %v115 = vrcp.pop %v112
  %v116 = vmul.f32 1.0, %v115
  %vm117 = vcmask 7168
  %118 = vst.msk [vmem:[%s3] sm:$0xff] %vm117, %v114
  %119 = vst.msk [vmem:[%s3 + $0x8] sm:$0xff] %vm117, %v116
  // Predicated region
  $region14: #{tpu_custom_call.1} parent=0 // pred_check
    _
  $region15: #{tpu_custom_call.1} parent=0 // pred_check_branch
    %121 = sbr.rel (0) target = $region17
  $region16: #{tpu_custom_call.1} parent=0 // pred_region
    _
  $region17: #{tpu_custom_call.1} parent=0 // pred_fallthru
    _
  // Predicated region
  $region18: #{tpu_custom_call.1} parent=0 // pred_check
    _
  $region19: #{tpu_custom_call.1} parent=0 // pred_check_branch
    %123 = sbr.rel (0) target = $region21
  $region20: #{tpu_custom_call.1} parent=0 // pred_region
    _
  $region21: #{tpu_custom_call.1} parent=0 // pred_fallthru
    _

</llo_original>
